<compile_context>
chip_gen: v7x
topology: tpu7x:2x2x1
jax: 0.10.0
libtpu: 0.0.40
codegen_flags: <defaults>
</compile_context>

<pallas_src>
import jax
import jax.numpy as jnp
from jax.experimental import pallas as pl
from jax.experimental.pallas import tpu as pltpu


def _round_up(x: int, m: int) -> int:
    return ((x + m - 1) // m) * m


def _make_kernel(smoothing: float, n_rows: int, n_classes: int, block_rows: int):
    keep = 1.0 - float(smoothing)
    uniform = float(smoothing) / float(n_classes)
    inv_n = 1.0 / float(n_rows)
    needs_mask = (n_rows % block_rows) != 0  # static: only mask a ragged tail

    def kernel(pred_ref, tgt_ref, out_ref, acc_ref):
        step = pl.program_id(0)

        @pl.when(step == 0)
        def _():
            acc_ref[0, 0] = jnp.float32(0.0)

        pred = pred_ref[...].astype(jnp.float32)  # (TM, C) f32 in-register
        tgt = tgt_ref[...]                        # (TM, 1) int32

        # Numerically stable log-softmax pieces; all reductions 2-D (keepdims).
        m = jnp.max(pred, axis=1, keepdims=True)                         # (TM,1)
        shifted = pred - m                                               # (TM,C)
        lse = jnp.log(jnp.sum(jnp.exp(shifted), axis=1, keepdims=True))  # (TM,1)

        # shifted value at the target class via a masked reduce (no one_hot temp).
        class_ids = jax.lax.broadcasted_iota(jnp.int32, (block_rows, n_classes), 1)
        shifted_t = jnp.sum(jnp.where(class_ids == tgt, shifted, 0.0),
                            axis=1, keepdims=True)                       # (TM,1)
        sum_shifted = jnp.sum(shifted, axis=1, keepdims=True)            # (TM,1)

        # -sum_c smooth_c * log_prob_c
        #   = -keep*(shifted_t - lse) - uniform*(sum_shifted - C*lse)
        per_row = (-keep * (shifted_t - lse)
                   - uniform * (sum_shifted - float(n_classes) * lse))   # (TM,1)

        if needs_mask:
            row_ids = (step * block_rows
                       + jax.lax.broadcasted_iota(jnp.int32, (block_rows, 1), 0))
            per_row = jnp.where(row_ids < n_rows, per_row, 0.0)

        # One cross-sublane reduce per tile into the SMEM scalar accumulator.
        acc_ref[0, 0] = acc_ref[0, 0] + jnp.sum(per_row)

        @pl.when(step == pl.num_programs(0) - 1)
        def _():
            out_ref[0, 0] = acc_ref[0, 0] * inv_n

    return kernel


def label_smoothing_cross_entropy(pred, target, smoothing: float = 0.1,
                                  block_rows: int | None = None):
    """pred: (N, C) float (f32/bf16) array; target: (N,) int array -> scalar f32 loss."""
    n_rows, n_classes = pred.shape

    # Sublane alignment: 8 rows for 4-byte dtypes, 16 for bf16, 32 for 1-byte.
    row_align = max(8, 32 // jnp.dtype(pred.dtype).itemsize)

    if block_rows is None:
        # Big enough to amortize ~0.35us/grid-step, small enough that a
        # double-buffered (TM, C) tile fits scoped VMEM on every generation
        # (v5e 16 MiB .. v7x 32 MiB) for moderate C.
        block_rows = min(1024, _round_up(n_rows, row_align))
    block_rows = max(row_align, _round_up(block_rows, row_align))

    n_pad = _round_up(n_rows, block_rows)
    if n_pad != n_rows:
        pred = jnp.pad(pred, ((0, n_pad - n_rows), (0, 0)))
        target = jnp.pad(target, ((0, n_pad - n_rows),))
    tgt2d = target.astype(jnp.int32).reshape(n_pad, 1)

    grid = (n_pad // block_rows,)
    kernel = _make_kernel(smoothing, n_rows, n_classes, block_rows)

    # TODO(synk): for vocab-scale C, add a class grid axis with an online
    # (running max / running sum) logsumexp so a (TM, C) tile never has to hold
    # the full class axis in VMEM.
    # TODO(synk): for tiny C (e.g. 7 emotion classes) the lane axis is only
    # C/128 utilized; a lane-dense repack (rows on lanes) would be needed to hit
    # roofline, at the cost of a very different reduction layout.
    out = pl.pallas_call(
        kernel,
        out_shape=jax.ShapeDtypeStruct((1, 1), jnp.float32),
        grid=grid,
        in_specs=[
            pl.BlockSpec((block_rows, n_classes), lambda i: (i, 0)),
            pl.BlockSpec((block_rows, 1), lambda i: (i, 0)),
        ],
        out_specs=pl.BlockSpec(memory_space=pltpu.MemorySpace.SMEM),
        scratch_shapes=[pltpu.SMEM((1, 1), jnp.float32)],
        compiler_params=pltpu.CompilerParams(
            dimension_semantics=("arbitrary",),  # row axis carries the scalar reduction
            vmem_limit_bytes=64 << 20,
        ),
    )(pred, tgt2d)
    return out[0, 0]


def _reference(pred, target, smoothing=0.1):
    n_classes = pred.shape[1]
    one_hot = jax.nn.one_hot(target, n_classes, dtype=jnp.float32)
    smooth = one_hot * (1.0 - smoothing) + smoothing / n_classes
    log_prob = jax.nn.log_softmax(pred.astype(jnp.float32), axis=1)
    return jnp.mean(jnp.sum(-smooth * log_prob, axis=1))


if __name__ == "__main__":
    key = jax.random.PRNGKey(0)
    k1, k2, k3, k4 = jax.random.split(key, 4)

    # Small batch of logits over 7 emotion classes (single grid step).
    N, C = 8, 7
    pred = jax.random.normal(k1, (N, C), dtype=jnp.float32)
    target = jax.random.randint(k2, (N,), 0, C, dtype=jnp.int32)
    loss = jax.block_until_ready(label_smoothing_cross_entropy(pred, target, 0.1))
    ref = _reference(pred, target, 0.1)
    assert jnp.allclose(loss, ref, atol=1e-5, rtol=1e-5), (loss, ref)

    # Multi-step grid + row padding + scalar accumulation path (N=20, TM=8 -> 3 steps).
    N2 = 20
    pred2 = jax.random.normal(k3, (N2, C), dtype=jnp.float32)
    target2 = jax.random.randint(k4, (N2,), 0, C, dtype=jnp.int32)
    loss2 = jax.block_until_ready(
        label_smoothing_cross_entropy(pred2, target2, 0.1, block_rows=8))
    ref2 = _reference(pred2, target2, 0.1)
    assert jnp.allclose(loss2, ref2, atol=1e-5, rtol=1e-5), (loss2, ref2)

    # bf16 logits stream through the DMA at 2 bytes/elem; cast to f32 in-kernel.
    pred3 = pred2.astype(jnp.bfloat16)
    loss3 = jax.block_until_ready(
        label_smoothing_cross_entropy(pred3, target2, 0.1, block_rows=8))
    ref3 = _reference(pred3, target2, 0.1)
    assert jnp.allclose(loss3, ref3, atol=1e-5, rtol=1e-5), (loss3, ref3)

    print("KERNEL_OK")
</pallas_src>

<mosaic_0001>
module attributes {stable_mosaic.version = 11 : i64} {
  func.func @kernel(%arg0: i32, %arg1: memref<8x7xf32, #tpu.memory_space<vmem>>, %arg2: memref<8x1xi32, #tpu.memory_space<vmem>>, %arg3: memref<1x1xf32, #tpu.memory_space<smem>>, %arg4: memref<1x1xf32, #tpu.memory_space<smem>>) attributes {dimension_semantics = [#tpu.dimension_semantics<arbitrary>], iteration_bounds = array<i64: 1>, scalar_prefetch = 0 : i64, scratch_operands = 1 : i64, tpu.core_type = #tpu.core_type<tc>, window_params = [{transform_indices = @transform_0, window_bounds = array<i64: 8, 7>}, {transform_indices = @transform_1, window_bounds = array<i64: 8, 1>}, {transform_indices = @transform_2, window_bounds = array<i64: 1, 1>}]} {
    %c0_i32 = arith.constant 0 : i32
    %0 = arith.cmpi eq, %arg0, %c0_i32 : i32
    %1 = arith.extui %0 : i1 to i32
    %c0_i32_0 = arith.constant 0 : i32
    %2 = arith.cmpi ne, %1, %c0_i32_0 : i32
    scf.if %2 {
      %cst_18 = arith.constant 0.000000e+00 : f32
      %c0_19 = arith.constant 0 : index
      %c0_20 = arith.constant 0 : index
      %41 = memref.load %arg4[%c0_19, %c0_20] : memref<1x1xf32, #tpu.memory_space<smem>>
      memref.store %cst_18, %arg4[%c0_19, %c0_20] : memref<1x1xf32, #tpu.memory_space<smem>>
    } else {
    }
    %c0 = arith.constant 0 : index
    %c0_1 = arith.constant 0 : index
    %3 = vector.load %arg1[%c0, %c0_1] : memref<8x7xf32, #tpu.memory_space<vmem>>, vector<8x7xf32>
    %c0_2 = arith.constant 0 : index
    %c0_3 = arith.constant 0 : index
    %4 = vector.load %arg2[%c0_2, %c0_3] : memref<8x1xi32, #tpu.memory_space<vmem>>, vector<8x1xi32>
    %cst = arith.constant dense<0xFF800000> : vector<8xf32>
    %5 = vector.multi_reduction <maximumf>, %3, %cst [1] : vector<8x7xf32> to vector<8xf32>
    %6 = vector.shape_cast %5 : vector<8xf32> to vector<8x1xf32>
    %7 = vector.broadcast %6 : vector<8x1xf32> to vector<8x7xf32>
    %8 = arith.subf %3, %7 : vector<8x7xf32>
    %9 = math.exp %8 : vector<8x7xf32>
    %cst_4 = arith.constant dense<0.000000e+00> : vector<8xf32>
    %10 = vector.multi_reduction <add>, %9, %cst_4 [1] : vector<8x7xf32> to vector<8xf32>
    %11 = vector.shape_cast %10 : vector<8xf32> to vector<8x1xf32>
    %12 = math.log %11 : vector<8x1xf32>
    %13 = tpu.iota {dimensions = array<i32: 1>} : vector<8x7xi32>
    %14 = vector.broadcast %4 : vector<8x1xi32> to vector<8x7xi32>
    %15 = arith.cmpi eq, %13, %14 : vector<8x7xi32>
    %cst_5 = arith.constant 0.000000e+00 : f32
    %16 = vector.broadcast %cst_5 : f32 to vector<8x7xf32>
    %17 = arith.select %15, %8, %16 : vector<8x7xi1>, vector<8x7xf32>
    %cst_6 = arith.constant dense<0.000000e+00> : vector<8xf32>
    %18 = vector.multi_reduction <add>, %17, %cst_6 [1] : vector<8x7xf32> to vector<8xf32>
    %19 = vector.shape_cast %18 : vector<8xf32> to vector<8x1xf32>
    %cst_7 = arith.constant dense<0.000000e+00> : vector<8xf32>
    %20 = vector.multi_reduction <add>, %8, %cst_7 [1] : vector<8x7xf32> to vector<8xf32>
    %21 = vector.shape_cast %20 : vector<8xf32> to vector<8x1xf32>
    %22 = arith.subf %19, %12 : vector<8x1xf32>
    %cst_8 = arith.constant -0.899999976 : f32
    %23 = vector.broadcast %cst_8 : f32 to vector<8x1xf32>
    %24 = arith.mulf %23, %22 : vector<8x1xf32>
    %cst_9 = arith.constant 7.000000e+00 : f32
    %25 = vector.broadcast %cst_9 : f32 to vector<8x1xf32>
    %26 = arith.mulf %25, %12 : vector<8x1xf32>
    %27 = arith.subf %21, %26 : vector<8x1xf32>
    %cst_10 = arith.constant 0.0142857144 : f32
    %28 = vector.broadcast %cst_10 : f32 to vector<8x1xf32>
    %29 = arith.mulf %28, %27 : vector<8x1xf32>
    %30 = arith.subf %24, %29 : vector<8x1xf32>
    %c0_11 = arith.constant 0 : index
    %c0_12 = arith.constant 0 : index
    %31 = memref.load %arg4[%c0_11, %c0_12] : memref<1x1xf32, #tpu.memory_space<smem>>
    %32 = vector.shape_cast %30 : vector<8x1xf32> to vector<1x8x1xf32>
    %cst_13 = arith.constant dense<0.000000e+00> : vector<1xf32>
    %33 = vector.multi_reduction <add>, %32, %cst_13 [1, 2] : vector<1x8x1xf32> to vector<1xf32>
    %34 = vector.shape_cast %33 : vector<1xf32> to vector<1x1x1xf32>
    %35 = vector.extract %34[0, 0, 0] : f32 from vector<1x1x1xf32>
    %36 = arith.addf %31, %35 : f32
    %c0_14 = arith.constant 0 : index
    %c0_15 = arith.constant 0 : index
    %37 = memref.load %arg4[%c0_14, %c0_15] : memref<1x1xf32, #tpu.memory_space<smem>>
    memref.store %36, %arg4[%c0_14, %c0_15] : memref<1x1xf32, #tpu.memory_space<smem>>
    %c0_i32_16 = arith.constant 0 : i32
    %38 = arith.cmpi eq, %arg0, %c0_i32_16 : i32
    %39 = arith.extui %38 : i1 to i32
    %c0_i32_17 = arith.constant 0 : i32
    %40 = arith.cmpi ne, %39, %c0_i32_17 : i32
    scf.if %40 {
      %c0_18 = arith.constant 0 : index
      %c0_19 = arith.constant 0 : index
      %41 = memref.load %arg4[%c0_18, %c0_19] : memref<1x1xf32, #tpu.memory_space<smem>>
      %cst_20 = arith.constant 1.250000e-01 : f32
      %42 = arith.mulf %41, %cst_20 : f32
      %c0_21 = arith.constant 0 : index
      %c0_22 = arith.constant 0 : index
      %43 = memref.load %arg3[%c0_21, %c0_22] : memref<1x1xf32, #tpu.memory_space<smem>>
      memref.store %42, %arg3[%c0_21, %c0_22] : memref<1x1xf32, #tpu.memory_space<smem>>
    } else {
    }
    return
  }
  func.func @transform_0(%arg0: i32) -> (i32, i32) {
    %c0_i32 = arith.constant 0 : i32
    %c0_i32_0 = arith.constant 0 : i32
    return %arg0, %c0_i32 : i32, i32
  }
  func.func @transform_1(%arg0: i32) -> (i32, i32) {
    %c0_i32 = arith.constant 0 : i32
    %c0_i32_0 = arith.constant 0 : i32
    return %arg0, %c0_i32 : i32, i32
  }
  func.func @transform_2(%arg0: i32) -> (i32, i32) {
    %c0_i32 = arith.constant 0 : i32
    %c0_i32_0 = arith.constant 0 : i32
    %c0_i32_1 = arith.constant 0 : i32
    return %c0_i32, %c0_i32_0 : i32, i32
  }
}

</mosaic_0001>

<llo_original>
// kernel: tpu_custom_call.1
$region0: #{tpu_custom_call.1}
  #allocation0 [shape = 'u32[]', space=smem, size = 0x4, offset = 0x4, fixed_abs, tag = 'smem constant byte address 0x4 - core index']
  #allocation1 [shape = 'u32[144,128]{1,0:T(1,128)}', space=vmem, size = 0x12000, scoped, tag = 'internal scratch']
  #allocation2 [shape = 'f32[1,1]{1,0:T(1,128)}', space=smem, size = 0x200, scoped, tag = 'scratch operand']
  %s0 = inlined_call_operand.hbm [shape: f32[8,7], index: 0, kind: input, shape index: {}]
  %s1 = inlined_call_operand.hbm [shape: s32[8,1], index: 1, kind: input, shape index: {}]
  %s2 = inlined_call_operand.hbm [shape: f32[1,1], index: 2, kind: output, shape index: {}]
  %s3 = sld [smem:[#allocation0]]
  $region34: #{tpu_custom_call.1} parent=0
    _
  %s5 = ssub.s32 1, %s3
  %s6 = scalar_select 0, %s5, %s3
  $region1: #{tpu_custom_call.1} parent=0
    #allocation3 [shape = 'u8[4096]{0}', space=vmem, size = 0x1000, scoped, tag = 'input window, operand 0, single buffered']
    #allocation4 [shape = 's32[1]{0}', space=sflag, size = 0x4, scoped, tag = 'scoped memory for tpu_custom_call.1']
    #allocation5 [shape = 's32[1]{0}', space=sflag, size = 0x4, scoped, tag = 'scoped memory for tpu_custom_call.1']
    #allocation6 [shape = 'u8[4096]{0}', space=vmem, size = 0x1000, scoped, tag = 'input window, operand 1, single buffered']
    #allocation7 [shape = 's32[1]{0}', space=sflag, size = 0x4, scoped, tag = 'scoped memory for tpu_custom_call.1']
    #allocation8 [shape = 'u8[512]{0}', space=smem, size = 0x200, scoped, tag = 'output window, operand 0, single buffered']
    %7 = vsyncpa [#allocation4], 0
    %8 = vsyncpa [#allocation7], 0
    %9 = vsyncpa [#allocation5], 0
    // Predicated region
    $region2: #{tpu_custom_call.1} parent=1 // pred_check
      _
    $region3: #{tpu_custom_call.1} parent=1 // pred_check_branch
      %11 = sbr.rel (0) target = $region5
    $region4: #{tpu_custom_call.1} parent=1 // pred_region
      %s13 = ssub.s32 128, 128
      %14 = vsyncadd [#allocation4], %s13
      %s16 = sshll.u32 [#allocation3], 4
      %s17 = int_to_ptr.vmem [resolvable:$true] %s16
      %19 = dma.hbm_to_vmem [thread:$0]  %s0, 128, %s17, [#allocation4]
    $region5: #{tpu_custom_call.1} parent=1 // pred_fallthru
      _
    // Predicated region
    $region6: #{tpu_custom_call.1} parent=1 // pred_check
      _
    $region7: #{tpu_custom_call.1} parent=1 // pred_check_branch
      %21 = sbr.rel (0) target = $region9
    $region8: #{tpu_custom_call.1} parent=1 // pred_region
      %s23 = ssub.s32 128, 128
      %24 = vsyncadd [#allocation7], %s23
      %s26 = sshll.u32 [#allocation6], 4
      %s27 = int_to_ptr.vmem [resolvable:$true] %s26
      %29 = dma.hbm_to_vmem [thread:$0]  %s1, 128, %s27, [#allocation7]
    $region9: #{tpu_custom_call.1} parent=1 // pred_fallthru
      _
    // Predicated region
    $region10: #{tpu_custom_call.1} parent=1 // pred_check
      _
    $region11: #{tpu_custom_call.1} parent=1 // pred_check_branch
      %31 = sbr.rel (0) target = $region13
    $region12: #{tpu_custom_call.1} parent=1 // pred_region
      %32 = dma.done [#allocation4], 128
    $region13: #{tpu_custom_call.1} parent=1 // pred_fallthru
      _
    // Predicated region
    $region14: #{tpu_custom_call.1} parent=1 // pred_check
      _
    $region15: #{tpu_custom_call.1} parent=1 // pred_check_branch
      %34 = sbr.rel (0) target = $region17
    $region16: #{tpu_custom_call.1} parent=1 // pred_region
      %35 = dma.done [#allocation7], 128
    $region17: #{tpu_custom_call.1} parent=1 // pred_fallthru
      _
    %p36 = scmp.eq.s32.totalorder 0, 0
    // Predicated region
    $region18: #{tpu_custom_call.1} parent=1 // pred_check
      %p37 = pneg %p36
    $region19: #{tpu_custom_call.1} parent=1 // pred_check_branch
      %39 = sbr.rel (%p37) target = $region21
    $region20: #{tpu_custom_call.1} parent=1 // pred_region
      %s40 = scalar_lea.smem [#allocation2], 0
      %41 = sst [smem:[%s40]] 0.0
    $region21: #{tpu_custom_call.1} parent=1 // pred_fallthru
      _
    %v42 = vld [vmem:[#allocation3] sm:$0xff]
    %v43 = vld [vmem:[#allocation6] sm:$0xff]
    %vm44 = vcmask 56320
    %v45 = vsel %vm44, %v42, -inf
    %46 = vmax.xlane.f32.xlu0 %v45
    %v47 = vpop.xlane.xlu0 %46
    %v48 = vsub.f32 %v42, %v47
    %v49 = vmul.f32 %v48, 1.442695
    %v50 = vpow.pop %v49
    %v51 = vsel %vm44, %v50, 0.0
    %52 = vadd.xlane.f32.xlu0 %v51
    %v53 = vpop.xlane.xlu0 %52
    %v54 = vlog2.pop %v53
    %v55 = vmul.f32 %v54, 0.6931472
    %v56 = vlaneseq
    %v57 = vand.u32 %v56, 127
    %58 = vset.pattern.permute.xlu0 0
    %59 = vperm.xlu0 %58, %v43
    %v60 = vpop.permute.xlu0 %59
    %vm61 = vcmp.eq.s32.totalorder %v57, %v60
    %v62 = vsel %vm61, %v48, 0.0
    %v63 = vsel %vm44, %v62, 0.0
    %64 = vadd.xlane.f32.xlu0 %v63
    %v65 = vpop.xlane.xlu0 %64
    %v66 = vsel %vm44, %v48, 0.0
    %67 = vadd.xlane.f32.xlu0 %v66
    %v68 = vpop.xlane.xlu0 %67
    %v69 = vsub.f32 %v65, %v55
    %v70 = vmul.f32 %v69, -0.9
    %v71 = vmul.f32 %v55, 7.0
    %v72 = vsub.f32 %v68, %v71
    %v73 = vmul.f32 %v72, 0.014285714
    %v74 = vsub.f32 %v70, %v73
    %s75 = sld [smem:[#allocation2]]
    %vm76 = vcmask 7168
    %v77 = vsel %vm76, %v74, 0.0
    %78 = vadd.xlane.f32.xlu0 %v77
    %v79 = vpop.xlane.xlu0 %78
    %v80 = vrot.slane %v79, 4
    %v81 = vadd.f32 %v79, %v80
    %v82 = vrot.slane %v81, 2
    %v83 = vadd.f32 %v81, %v82
    %v84 = vrot.slane %v83, 1
    %v85 = vadd.f32 %v83, %v84
    %s86 = vtos %v85
    %s87 = sadd.f32 %s75, %s86
    %s88 = scalar_lea.smem [#allocation2], 0
    %89 = sst [smem:[%s88]] %s87
    // Predicated region
    $region22: #{tpu_custom_call.1} parent=1 // pred_check
      %p90 = pneg %p36
    $region23: #{tpu_custom_call.1} parent=1 // pred_check_branch
      %92 = sbr.rel (%p90) target = $region25
    $region24: #{tpu_custom_call.1} parent=1 // pred_region
      %s93 = sld [smem:[#allocation2]]
      %s94 = smul.f32 %s93, 0.125
      %s95 = scalar_lea.smem [#allocation8], 0
      %96 = sst [smem:[%s95]] %s94
    $region25: #{tpu_custom_call.1} parent=1 // pred_fallthru
      _
    // Predicated region
    $region26: #{tpu_custom_call.1} parent=1 // pred_check
      _
    $region27: #{tpu_custom_call.1} parent=1 // pred_check_branch
      %98 = sbr.rel (0) target = $region29
    $region28: #{tpu_custom_call.1} parent=1 // pred_region
      %s100 = ssub.s32 16, 16
      %101 = vsyncadd [#allocation5], %s100
      %104 = dma.smem_to_hbm [#allocation8], 16, %s2, [#allocation5]
    $region29: #{tpu_custom_call.1} parent=1 // pred_fallthru
      _
    // Predicated region
    $region30: #{tpu_custom_call.1} parent=1 // pred_check
      _
    $region31: #{tpu_custom_call.1} parent=1 // pred_check_branch
      %106 = sbr.rel (0) target = $region33
    $region32: #{tpu_custom_call.1} parent=1 // pred_region
      %107 = dma.done [#allocation5], 16
    $region33: #{tpu_custom_call.1} parent=1 // pred_fallthru
      _
    %108 = sfence
    %109 = vsyncpa [#allocation4], 1
    %110 = vsyncpa [#allocation7], 1
    %111 = vsyncpa [#allocation5], 1

</llo_original>
